<compile_context>
chip_gen: v6e
topology: v6e:2x2x1
jax: 0.10.0
libtpu: 0.0.40
codegen_flags: <defaults>
</compile_context>

<pallas_src>
import jax
import jax.numpy as jnp
from jax.experimental import pallas as pl
from jax.experimental.pallas import tpu as pltpu


# ----------------------------------------------------------------------------- helpers

def _vmem_spec():
    return pl.BlockSpec(memory_space=pltpu.MemorySpace.VMEM)


def _split_gate_weights(whh):
    """(H, k*H) with column blocks [gate0|gate1|...] -> (k, H, H): one leading-dim slot per gate."""
    H = whh.shape[0]
    k = whh.shape[1] // H
    return jnp.transpose(whh.reshape(H, k, H), (1, 0, 2))


# ----------------------------------------------------------------------------- hoisted input projection

def _linear_kernel(x_ref, w_ref, b_ref, o_ref):
    o_ref[...] = jnp.dot(x_ref[...], w_ref[...],
                         preferred_element_type=jnp.float32) + b_ref[...]


def linear_proj(x2d, w, b, *, block_rows=512):
    """(N, E) @ (E, F) + b -- row-tiled pipeline with the weight VMEM-resident."""
    N, E = x2d.shape
    F = w.shape[1]
    bn = min(block_rows, N)
    return pl.pallas_call(
        _linear_kernel,
        out_shape=jax.ShapeDtypeStruct((N, F), jnp.float32),
        grid_spec=pltpu.PrefetchScalarGridSpec(
            num_scalar_prefetch=0,
            grid=(pl.cdiv(N, bn),),
            in_specs=[pl.BlockSpec((bn, E), lambda i: (i, 0)),
                      pl.BlockSpec((E, F), lambda i: (0, 0)),
                      pl.BlockSpec((1, F), lambda i: (0, 0))],
            out_specs=pl.BlockSpec((bn, F), lambda i: (i, 0))),
        compiler_params=pltpu.CompilerParams(
            dimension_semantics=("parallel",),
            vmem_limit_bytes=32 * 1024 * 1024),
    )(x2d, w, b.reshape(1, -1))


# ----------------------------------------------------------------------------- GRU cell (shared)

def _gru_cell(gr, gz, gn, h, wr, wz, wn, br, bz, bn_):
    """One GRU step; gr/gz/gn are the precomputed input gates x@Wih + bih (PyTorch gate order r,z,n)."""
    hr = jnp.dot(h, wr, preferred_element_type=jnp.float32) + br
    hz = jnp.dot(h, wz, preferred_element_type=jnp.float32) + bz
    hn = jnp.dot(h, wn, preferred_element_type=jnp.float32) + bn_
    r = jax.nn.sigmoid(gr + hr)
    z = jax.nn.sigmoid(gz + hz)
    n = jnp.tanh(gn + r * hn)
    return (1.0 - z) * n + z * h


# ----------------------------------------------------------------------------- fused bidirectional encoder scan

def _bi_gru_scan_kernel(gx_ref, whh_ref, bhh_ref, hf_out_ref, hb_out_ref):
    S = gx_ref.shape[0]
    B = gx_ref.shape[2]
    H = gx_ref.shape[3]

    # Recurrent weights/biases: read once, VMEM-resident across the whole sequence.
    wfr, wfz, wfn = whh_ref[0], whh_ref[1], whh_ref[2]
    wbr, wbz, wbn = whh_ref[3], whh_ref[4], whh_ref[5]
    bfr, bfz, bfn = bhh_ref[0], bhh_ref[1], bhh_ref[2]
    bbr, bbz, bbn = bhh_ref[3], bhh_ref[4], bhh_ref[5]

    def step(s, carry):
        hf, hb = carry
        gf = gx_ref[s]            # (6, B, H): fwd gates 0..2, bwd gates 3..5
        gb = gx_ref[S - 1 - s]    # time reversal via index arithmetic (no HBM copy)
        hf = _gru_cell(gf[0], gf[1], gf[2], hf, wfr, wfz, wfn, bfr, bfz, bfn)
        hb = _gru_cell(gb[3], gb[4], gb[5], hb, wbr, wbz, wbn, bbr, bbz, bbn)
        hf_out_ref[s] = hf
        hb_out_ref[S - 1 - s] = hb   # backward states land in natural time order
        return hf, hb

    zero = jnp.zeros((B, H), jnp.float32)
    jax.lax.fori_loop(0, S, step, (zero, zero), unroll=True)


def bi_gru_scan(gx, whh6, bhh6):
    S, _, B, H = gx.shape
    return pl.pallas_call(
        _bi_gru_scan_kernel,
        out_shape=(jax.ShapeDtypeStruct((S, B, H), jnp.float32),
                   jax.ShapeDtypeStruct((S, B, H), jnp.float32)),
        in_specs=[_vmem_spec(), _vmem_spec(), _vmem_spec()],
        out_specs=(_vmem_spec(), _vmem_spec()),
        compiler_params=pltpu.CompilerParams(vmem_limit_bytes=32 * 1024 * 1024),
    )(gx, whh6, bhh6)


# ----------------------------------------------------------------------------- decoder GRU scan

def _gru_scan_kernel(gx_ref, h0_ref, whh_ref, bhh_ref, o_ref):
    T = gx_ref.shape[0]
    wr, wz, wn = whh_ref[0], whh_ref[1], whh_ref[2]
    br, bz, bn_ = bhh_ref[0], bhh_ref[1], bhh_ref[2]

    def step(t, h):
        g = gx_ref[t]             # (3, B, D)
        h = _gru_cell(g[0], g[1], g[2], h, wr, wz, wn, br, bz, bn_)
        o_ref[t] = h
        return h

    jax.lax.fori_loop(0, T, step, h0_ref[...], unroll=True)


def gru_scan(gx, h0, whh3, bhh3):
    T, _, B, D = gx.shape
    return pl.pallas_call(
        _gru_scan_kernel,
        out_shape=jax.ShapeDtypeStruct((T, B, D), jnp.float32),
        in_specs=[_vmem_spec(), _vmem_spec(), _vmem_spec(), _vmem_spec()],
        out_specs=_vmem_spec(),
        compiler_params=pltpu.CompilerParams(vmem_limit_bytes=32 * 1024 * 1024),
    )(gx, h0, whh3, bhh3)


# ----------------------------------------------------------------------------- fused attention + vocab + classifier

def heads(h_dec, memory, mask_row, mask_col, w_attn, w_out_h, w_out_c, b_out,
          w_cls, b_cls, valid_v):
    B, T, D = h_dec.shape
    S = memory.shape[1]
    Vpad = w_out_h.shape[1]      # lane-dense (multiple of 128) padded vocab width
    C = w_cls.shape[1]

    def kernel(h_ref, m_ref, maskr_ref, maskc_ref, wa_ref, woh_ref, woc_ref,
               bo_ref, wc_ref, bc_ref, attn_ref, dist_ref, logit_ref):
        h = h_ref[0]              # (T, D)
        m = m_ref[0]              # (S, D)  read once, reused by attention/context/classifier
        mrow = maskr_ref[0]       # (1, S)
        mcol = maskc_ref[0]       # (S, 1)

        # --- "general" attention: scores = (h @ Wa) @ memory^T; MXU takes the transposed RHS ---
        proj = jnp.dot(h, wa_ref[...], preferred_element_type=jnp.float32)       # (T, D)
        scores = jax.lax.dot_general(proj, m, (((1,), (1,)), ((), ())),
                                     preferred_element_type=jnp.float32)         # (T, S)
        scores = jnp.where(mrow > 0.5, scores, jnp.float32(-1e9))
        scores = scores - jnp.max(scores, axis=-1, keepdims=True)
        p = jnp.exp(scores)
        attn = p * pl.reciprocal(jnp.sum(p, axis=-1, keepdims=True))
        attn_ref[0] = attn
        ctx = jnp.dot(attn, m, preferred_element_type=jnp.float32)               # (T, D)

        # --- vocab distribution; w_out split so the (T, 2D) concat never materializes ---
        logits = (jnp.dot(h, woh_ref[...], preferred_element_type=jnp.float32)
                  + jnp.dot(ctx, woc_ref[...], preferred_element_type=jnp.float32)
                  + bo_ref[...])                                                  # (T, Vpad)
        col = jax.lax.broadcasted_iota(jnp.int32, logits.shape, 1)
        logits = jnp.where(col < valid_v, logits, jnp.float32(-1e30))
        logits = logits - jnp.max(logits, axis=-1, keepdims=True)
        pv = jnp.exp(logits)
        dist_ref[0] = pv * pl.reciprocal(jnp.sum(pv, axis=-1, keepdims=True))     # lane-dense store

        # --- masked max-pool classifier (MaxPoolClassifier, 'max', ordinal=False) ---
        masked = jnp.where(mcol > 0.5, m, jnp.float32(-1e9))
        pooled = jnp.max(masked, axis=0, keepdims=True)                           # (1, D)
        cl = jnp.dot(pooled, wc_ref[...], preferred_element_type=jnp.float32) + bc_ref[...]
        cl = cl - jnp.max(cl, axis=-1, keepdims=True)
        logit_ref[0] = cl - jnp.log(jnp.sum(jnp.exp(cl), axis=-1, keepdims=True))

    attn, dist, logit3 = pl.pallas_call(
        kernel,
        out_shape=(jax.ShapeDtypeStruct((B, T, S), jnp.float32),
                   jax.ShapeDtypeStruct((B, T, Vpad), jnp.float32),
                   jax.ShapeDtypeStruct((B, 1, C), jnp.float32)),
        grid_spec=pltpu.PrefetchScalarGridSpec(
            num_scalar_prefetch=0,
            grid=(B,),
            in_specs=[pl.BlockSpec((1, T, D), lambda b: (b, 0, 0)),
                      pl.BlockSpec((1, S, D), lambda b: (b, 0, 0)),
                      pl.BlockSpec((1, 1, S), lambda b: (b, 0, 0)),
                      pl.BlockSpec((1, S, 1), lambda b: (b, 0, 0)),
                      pl.BlockSpec((D, D), lambda b: (0, 0)),
                      pl.BlockSpec((D, Vpad), lambda b: (0, 0)),
                      pl.BlockSpec((D, Vpad), lambda b: (0, 0)),
                      pl.BlockSpec((1, Vpad), lambda b: (0, 0)),
                      pl.BlockSpec((D, C), lambda b: (0, 0)),
                      pl.BlockSpec((1, C), lambda b: (0, 0))],
            out_specs=(pl.BlockSpec((1, T, S), lambda b: (b, 0, 0)),
                       pl.BlockSpec((1, T, Vpad), lambda b: (b, 0, 0)),
                       pl.BlockSpec((1, 1, C), lambda b: (b, 0, 0)))),
        compiler_params=pltpu.CompilerParams(
            dimension_semantics=("parallel",),
            vmem_limit_bytes=32 * 1024 * 1024),
    )(h_dec, memory, mask_row, mask_col, w_attn, w_out_h, w_out_c,
      b_out.reshape(1, -1), w_cls, b_cls.reshape(1, -1))
    # TODO(synk): at real vocab sizes on v7x, add a vocab-tile grid axis for the w_out halves
    # instead of keeping them fully VMEM-resident (64 MiB VMEM per TC).
    return attn, dist, jnp.squeeze(logit3, axis=1)


# ----------------------------------------------------------------------------- full forward

def multi_task_basic_forward(params, src, src_lens, trg, src_oov, max_num_oov,
                             src_mask, trg_mask, rating, src_sent_positions,
                             src_sent_nums, src_sent_mask, rating_tokens_tensor):
    del src_lens, src_oov, trg_mask, rating, src_sent_positions, src_sent_nums
    del src_sent_mask, rating_tokens_tensor   # unused in this simplified forward

    emb = params['embedding']
    src_emb = jnp.take(emb, src, axis=0)      # (B, S, E)
    trg_emb = jnp.take(emb, trg, axis=0)      # (B, T, E)
    B, S, E = src_emb.shape
    T = trg_emb.shape[1]
    H = params['enc_fwd']['whh'].shape[0]
    D = 2 * H
    V = params['w_out'].shape[1]

    # ---- bidirectional GRU encoder: hoisted input projection + one fused weight-resident scan ----
    src_emb_t = jnp.transpose(src_emb, (1, 0, 2)).reshape(S * B, E)
    wih_enc = jnp.concatenate([params['enc_fwd']['wih'],
                               params['enc_bwd']['wih']], axis=1)     # (E, 6H)
    bih_enc = jnp.concatenate([params['enc_fwd']['bih'],
                               params['enc_bwd']['bih']], axis=0)     # (6H,)
    gx_enc = linear_proj(src_emb_t, wih_enc, bih_enc)                 # (S*B, 6H)
    # (S, 6, B, H): gate axis leading so the recurrence never lane-slices the 3H axis.
    gx_enc = jnp.transpose(gx_enc.reshape(S, B, 6, H), (0, 2, 1, 3))

    whh_enc = jnp.concatenate([_split_gate_weights(params['enc_fwd']['whh']),
                               _split_gate_weights(params['enc_bwd']['whh'])], axis=0)   # (6,H,H)
    bhh_enc = jnp.concatenate([params['enc_fwd']['bhh'].reshape(3, 1, H),
                               params['enc_bwd']['bhh'].reshape(3, 1, H)], axis=0)       # (6,1,H)

    # TODO(synk): backward direction ignores src_lens (no pack_padded_sequence); padded steps are fed first.
    hs_fwd, hs_bwd = bi_gru_scan(gx_enc, whh_enc, bhh_enc)            # (S,B,H) each, natural time order
    memory = jnp.transpose(jnp.concatenate([hs_fwd, hs_bwd], axis=-1), (1, 0, 2))  # (B, S, 2H)
    enc_final = jnp.concatenate([hs_fwd[-1], hs_bwd[0]], axis=-1)     # (B, 2H)

    # ---- decoder GRU (teacher forcing, no input feeding) ----
    p_dec = params['dec']
    trg_emb_t = jnp.transpose(trg_emb, (1, 0, 2)).reshape(T * B, E)
    gx_dec = linear_proj(trg_emb_t, p_dec['wih'], p_dec['bih'])       # (T*B, 3D)
    gx_dec = jnp.transpose(gx_dec.reshape(T, B, 3, D), (0, 2, 1, 3))  # (T, 3, B, D)
    hs_dec_t = gru_scan(gx_dec, enc_final,
                        _split_gate_weights(p_dec['whh']),
                        p_dec['bhh'].reshape(3, 1, D))                # (T, B, D)
    h_dec = jnp.transpose(hs_dec_t, (1, 0, 2))                        # (B, T, D)
    h_t = hs_dec_t[-1]                                                # (B, D)

    # ---- fused attention + output distribution + classifier head ----
    Vp = V + max_num_oov
    Vpad = ((Vp + 127) // 128) * 128           # lane-dense output slab
    pad = Vpad - V
    w_out = params['w_out']                    # (2D, V) split into h-part / ctx-part, columns padded
    woh = jnp.pad(w_out[:D], ((0, 0), (0, pad)))
    woc = jnp.pad(w_out[D:], ((0, 0), (0, pad)))
    bo = jnp.pad(params['b_out'], (0, pad))
    mask_row = src_mask[:, None, :]            # (B, 1, S)
    mask_col = src_mask[:, :, None]            # (B, S, 1)
    # TODO(synk): copy / pointer-generator over src_oov omitted; OOV slots of decoder_dist stay zero.
    attn_dist, dist_pad, logit = heads(h_dec, memory, mask_row, mask_col,
                                       params['w_attn'], woh, woc, bo,
                                       params['w_cls'], params['b_cls'], V)
    decoder_dist = dist_pad[:, :, :Vp]

    coverage = None            # coverage mechanism disabled
    classify_attn_dist = None  # 'max' classifier has no attention distribution
    return decoder_dist, h_t, attn_dist, enc_final, coverage, logit, classify_attn_dist


# ----------------------------------------------------------------------------- parameter init

def init_params(key, vocab, emb_dim, enc_hidden, num_classes):
    d = 2 * enc_hidden
    keys = jax.random.split(key, 16)

    def w(k, shape):
        return (jax.random.normal(k, shape, jnp.float32) * 0.1).astype(jnp.float32)

    return {
        'embedding': w(keys[0], (vocab, emb_dim)),
        'enc_fwd': {'wih': w(keys[1], (emb_dim, 3 * enc_hidden)),
                    'whh': w(keys[2], (enc_hidden, 3 * enc_hidden)),
                    'bih': w(keys[3], (3 * enc_hidden,)),
                    'bhh': w(keys[4], (3 * enc_hidden,))},
        'enc_bwd': {'wih': w(keys[5], (emb_dim, 3 * enc_hidden)),
                    'whh': w(keys[6], (enc_hidden, 3 * enc_hidden)),
                    'bih': w(keys[7], (3 * enc_hidden,)),
                    'bhh': w(keys[8], (3 * enc_hidden,))},
        'dec': {'wih': w(keys[9], (emb_dim, 3 * d)),
                'whh': w(keys[10], (d, 3 * d)),
                'bih': w(keys[11], (3 * d,)),
                'bhh': w(keys[12], (3 * d,))},
        'w_attn': w(keys[13], (d, d)),
        'w_out': w(keys[14], (2 * d, vocab)),
        'b_out': jnp.zeros((vocab,), jnp.float32),
        'w_cls': w(keys[15], (d, num_classes)),
        'b_cls': jnp.zeros((num_classes,), jnp.float32),
    }


# ----------------------------------------------------------------------------- main

if __name__ == "__main__":
    B, S, T = 2, 16, 8
    vocab, emb_dim, enc_hidden, num_classes = 50, 32, 32, 4
    max_num_oov = 3

    key = jax.random.PRNGKey(0)
    k_param, k_src, k_trg, k_rt = jax.random.split(key, 4)
    params = init_params(k_param, vocab, emb_dim, enc_hidden, num_classes)

    src = jax.random.randint(k_src, (B, S), 0, vocab, dtype=jnp.int32)
    trg = jax.random.randint(k_trg, (B, T), 0, vocab, dtype=jnp.int32)
    src_lens = jnp.array([S, S - 4], dtype=jnp.int32)
    src_mask = (jnp.arange(S)[None, :] < src_lens[:, None]).astype(jnp.float32)  # (B, S)
    trg_mask = jnp.ones((B, T), jnp.float32)
    src_oov = src
    rating = jnp.zeros((B,), jnp.int32)
    src_sent_positions = jnp.zeros((B, 4), jnp.int32)
    src_sent_nums = jnp.full((B,), 4, jnp.int32)
    src_sent_mask = jnp.ones((B, 4), jnp.float32)
    rating_tokens_tensor = jax.random.randint(k_rt, (B, 4), 0, vocab, dtype=jnp.int32)

    out = multi_task_basic_forward(
        params, src, src_lens, trg, src_oov, max_num_oov, src_mask, trg_mask,
        rating, src_sent_positions, src_sent_nums, src_sent_mask, rating_tokens_tensor)

    (decoder_dist, h_t, attn_dist, enc_final, coverage, logit, classify_attn_dist) = out
    jax.block_until_ready((decoder_dist, h_t, attn_dist, enc_final, logit))

    assert decoder_dist.shape == (B, T, vocab + max_num_oov)
    assert h_t.shape == (B, 2 * enc_hidden)
    assert attn_dist.shape == (B, T, S)
    assert enc_final.shape == (B, 2 * enc_hidden)
    assert logit.shape == (B, num_classes)
    print("KERNEL_OK")
</pallas_src>

<mosaic_0001>
module attributes {stable_mosaic.version = 11 : i64} {
  func.func @_linear_kernel(%arg0: i32, %arg1: memref<32x32xf32, #tpu.memory_space<vmem>>, %arg2: memref<32x192xf32, #tpu.memory_space<vmem>>, %arg3: memref<1x192xf32, #tpu.memory_space<vmem>>, %arg4: memref<32x192xf32, #tpu.memory_space<vmem>>) attributes {dimension_semantics = [#tpu.dimension_semantics<parallel>], iteration_bounds = array<i64: 1>, scalar_prefetch = 0 : i64, scratch_operands = 0 : i64, tpu.core_type = #tpu.core_type<tc>, window_params = [{transform_indices = @transform_0, window_bounds = array<i64: 32, 32>}, {pipeline_mode = #tpu.pipeline_mode<synchronous>, transform_indices = @transform_1, window_bounds = array<i64: 32, 192>}, {pipeline_mode = #tpu.pipeline_mode<synchronous>, transform_indices = @transform_2, window_bounds = array<i64: 1, 192>}, {transform_indices = @transform_3, window_bounds = array<i64: 32, 192>}]} {
    %c0 = arith.constant 0 : index
    %c0_0 = arith.constant 0 : index
    %0 = vector.load %arg1[%c0, %c0_0] : memref<32x32xf32, #tpu.memory_space<vmem>>, vector<32x32xf32>
    %c0_1 = arith.constant 0 : index
    %c0_2 = arith.constant 0 : index
    %1 = vector.load %arg2[%c0_1, %c0_2] : memref<32x192xf32, #tpu.memory_space<vmem>>, vector<32x192xf32>
    %cst = arith.constant dense<0.000000e+00> : vector<32x192xf32>
    %2 = tpu.matmul %0, %1, %cst {dimension_numbers = #tpu.dot_dimension_numbers<[1], [0], [0], [1], [0, 0, 1, 1], [], []>} : vector<32x32xf32>, vector<32x192xf32>, vector<32x192xf32> -> vector<32x192xf32>
    %c0_3 = arith.constant 0 : index
    %c0_4 = arith.constant 0 : index
    %3 = vector.load %arg3[%c0_3, %c0_4] : memref<1x192xf32, #tpu.memory_space<vmem>>, vector<1x192xf32>
    %4 = vector.broadcast %3 : vector<1x192xf32> to vector<32x192xf32>
    %5 = arith.addf %2, %4 : vector<32x192xf32>
    %c0_5 = arith.constant 0 : index
    %c0_6 = arith.constant 0 : index
    %6 = vector.load %arg4[%c0_5, %c0_6] : memref<32x192xf32, #tpu.memory_space<vmem>>, vector<32x192xf32>
    tpu.vector_store %arg4[%c0_5, %c0_6], %5 {strides = array<i32>} : memref<32x192xf32, #tpu.memory_space<vmem>>, vector<32x192xf32>,
    return
  }
  func.func @transform_0(%arg0: i32) -> (i32, i32) {
    %c0_i32 = arith.constant 0 : i32
    %c0_i32_0 = arith.constant 0 : i32
    return %arg0, %c0_i32 : i32, i32
  }
  func.func @transform_1(%arg0: i32) -> (i32, i32) {
    %c0_i32 = arith.constant 0 : i32
    %c0_i32_0 = arith.constant 0 : i32
    %c0_i32_1 = arith.constant 0 : i32
    return %c0_i32, %c0_i32_0 : i32, i32
  }
  func.func @transform_2(%arg0: i32) -> (i32, i32) {
    %c0_i32 = arith.constant 0 : i32
    %c0_i32_0 = arith.constant 0 : i32
    %c0_i32_1 = arith.constant 0 : i32
    return %c0_i32, %c0_i32_0 : i32, i32
  }
  func.func @transform_3(%arg0: i32) -> (i32, i32) {
    %c0_i32 = arith.constant 0 : i32
    %c0_i32_0 = arith.constant 0 : i32
    return %arg0, %c0_i32 : i32, i32
  }
}

</mosaic_0001>

<llo_original>
// kernel: tpu_custom_call.1
$region0: #{tpu_custom_call.1}
  #allocation0 [shape = 'u32[]', space=smem, size = 0x4, offset = 0x4, fixed_abs, tag = 'smem constant byte address 0x4 - core index']
  #allocation1 [shape = 'u32[144,128]{1,0:T(1,128)}', space=vmem, size = 0x12000, scoped, tag = 'internal scratch']
  %s0 = inlined_call_operand.hbm [shape: f32[32,32], index: 0, kind: input, shape index: {}]
  %s1 = inlined_call_operand.hbm [shape: f32[32,192], index: 1, kind: input, shape index: {}]
  %s2 = inlined_call_operand.vmem [shape: f32[1,192], index: 2, kind: input, shape index: {}]
  %s3 = inlined_call_operand.hbm [shape: f32[32,192], index: 3, kind: output, shape index: {}]
  %s4 = sld [smem:[#allocation0]]
  $region30: #{tpu_custom_call.1} parent=0
    _
  %s6 = ssub.s32 1, %s4
  %s7 = scalar_select 0, %s6, %s4
  $region1: #{tpu_custom_call.1} parent=0
    #allocation2 [shape = 'u8[16384]{0}', space=vmem, size = 0x4000, scoped, tag = 'input window, operand 0, single buffered']
    #allocation3 [shape = 's32[1]{0}', space=sflag, size = 0x4, scoped, tag = 'scoped memory for tpu_custom_call.1']
    #allocation4 [shape = 's32[1]{0}', space=sflag, size = 0x4, scoped, tag = 'scoped memory for tpu_custom_call.1']
    #allocation5 [shape = 'u8[32768]{0}', space=vmem, size = 0x8000, scoped, tag = 'input window, operand 1, single buffered']
    #allocation6 [shape = 's32[1]{0}', space=sflag, size = 0x4, scoped, tag = 'scoped memory for tpu_custom_call.1']
    #allocation7 [shape = 'u8[32768]{0}', space=vmem, size = 0x8000, scoped, tag = 'output window, operand 0, single buffered']
    %8 = vsyncpa [#allocation3], 0
    %9 = vsyncpa [#allocation6], 0
    %10 = vsyncpa [#allocation4], 0
    // Predicated region
    $region2: #{tpu_custom_call.1} parent=1 // pred_check
      _
    $region3: #{tpu_custom_call.1} parent=1 // pred_check_branch
      %12 = sbr.rel (0) target = $region5
    $region4: #{tpu_custom_call.1} parent=1 // pred_region
      %s14 = ssub.s32 512, 512
      %15 = vsyncadd [#allocation3], %s14
      %s16 = sshll.u32 [#allocation2], 4
      %s17 = int_to_ptr.vmem [resolvable:$true] %s16
      %22 = dma.hbm_to_vmem [thread:$0]  %s0, 512, %s17, [#allocation3], 128, 128, 8
    $region5: #{tpu_custom_call.1} parent=1 // pred_fallthru
      _
    // Predicated region
    $region6: #{tpu_custom_call.1} parent=1 // pred_check
      _
    $region7: #{tpu_custom_call.1} parent=1 // pred_check_branch
      %24 = sbr.rel (0) target = $region9
    $region8: #{tpu_custom_call.1} parent=1 // pred_region
      %s26 = ssub.s32 1024, 1024
      %27 = vsyncadd [#allocation6], %s26
      %s28 = sshll.u32 [#allocation5], 4
      %s29 = int_to_ptr.vmem [resolvable:$true] %s28
      %34 = dma.hbm_to_vmem [thread:$0]  %s1, 1024, %s29, [#allocation6], 256, 256, 16
    $region9: #{tpu_custom_call.1} parent=1 // pred_fallthru
      _
    // Predicated region
    $region10: #{tpu_custom_call.1} parent=1 // pred_check
      _
    $region11: #{tpu_custom_call.1} parent=1 // pred_check_branch
      %36 = sbr.rel (0) target = $region13
    $region12: #{tpu_custom_call.1} parent=1 // pred_region
      _
    $region13: #{tpu_custom_call.1} parent=1 // pred_fallthru
      _
    // Predicated region
    $region14: #{tpu_custom_call.1} parent=1 // pred_check
      _
    $region15: #{tpu_custom_call.1} parent=1 // pred_check_branch
      %38 = sbr.rel (0) target = $region17
    $region16: #{tpu_custom_call.1} parent=1 // pred_region
      %39 = dma.done [#allocation3], 512
    $region17: #{tpu_custom_call.1} parent=1 // pred_fallthru
      _
    // Predicated region
    $region18: #{tpu_custom_call.1} parent=1 // pred_check
      _
    $region19: #{tpu_custom_call.1} parent=1 // pred_check_branch
      %41 = sbr.rel (0) target = $region21
    $region20: #{tpu_custom_call.1} parent=1 // pred_region
      %42 = dma.done [#allocation6], 1024
    $region21: #{tpu_custom_call.1} parent=1 // pred_fallthru
      _
    %v43 = vld [vmem:[#allocation2] sm:$0xff]
    %v44 = vld [vmem:[#allocation2 + $0x8] sm:$0xff]
    %v45 = vld [vmem:[#allocation2 + $0x10] sm:$0xff]
    %v46 = vld [vmem:[#allocation2 + $0x18] sm:$0xff]
    %v47 = vld [vmem:[#allocation5] sm:$0xff]
    %v48 = vld [vmem:[#allocation5 + $0x8] sm:$0xff]
    %v49 = vld [vmem:[#allocation5 + $0x10] sm:$0xff]
    %v50 = vld [vmem:[#allocation5 + $0x18] sm:$0xff]
    %v51 = vld [vmem:[#allocation5 + $0x20] sm:$0xff]
    %v52 = vld [vmem:[#allocation5 + $0x28] sm:$0xff]
    %v53 = vld [vmem:[#allocation5 + $0x30] sm:$0xff]
    %v54 = vld [vmem:[#allocation5 + $0x38] sm:$0xff]
    %v55 = vld [vmem:[%s2] sm:$0x3]
    %v57 = vlaneseq
    %v58 = vshrl.u32 %v57, 7
    %v59 = vsub.s32 0, %v58
    %v60 = vrot.slane %v55, %v59
    %v61 = vlaneseq
    %v62 = vshrl.u32 %v61, 7
    %v63 = vsub.s32 1, %v62
    %v64 = vrot.slane %v55, %v63
    %vm67 = vcmask 261120
    %v69 = vsel %vm67, %v43, 0
    %v72 = vsel %vm67, %v44, 0
    %v75 = vsel %vm67, %v45, 0
    %v78 = vsel %vm67, %v46, 0
    %80 = vmatprep.subr.mxu0 0.0
    %81 = vmatpush1.msra.mxu0 0.0
    %82 = vmatprep.subr.mxu0 0.0
    %83 = vmatpush1.msra.mxu0 0.0
    %84 = vmatprep.subr.mxu0 0.0
    %85 = vmatpush1.msra.mxu0 0.0
    %86 = vmatprep.subr.mxu0 0.0
    %87 = vmatpush1.msra.mxu0 0.0
    %88 = vmatprep.subr.mxu0 0.0
    %89 = vmatpush1.msra.mxu0 0.0
    %90 = vmatprep.subr.mxu0 0.0
    %91 = vmatpush1.msra.mxu0 0.0
    %92 = vmatprep.subr.mxu0 0.0
    %93 = vmatpush1.msra.mxu0 0.0
    %94 = vmatprep.subr.mxu0 0.0
    %95 = vmatpush1.msra.mxu0 0.0
    %96 = vmatprep.subr.mxu0 0.0
    %97 = vmatpush1.msra.mxu0 0.0
    %98 = vmatprep.subr.mxu0 0.0
    %99 = vmatpush1.msra.mxu0 0.0
    %100 = vmatprep.subr.mxu0 0.0
    %101 = vmatpush1.msra.mxu0 0.0
    %102 = vmatprep.subr.mxu0 0.0
    %103 = vmatpush1.msra.mxu0 0.0
    %104 = vmatprep.subr.mxu0 %v54
    %105 = vmatpush1.msra.mxu0 %v53
    %106 = vmatprep.subr.mxu0 %v52
    %107 = vmatpush1.msra.mxu0 %v51
    %108 = vmatprep.subr.mxu0 %v50
    %109 = vmatpush1.msra.mxu0 %v49
    %110 = vmatprep.subr.mxu0 %v48
    %111 = vmatpush1.msra.mxu0 %v47
    %112 = vmatprep.subr.mxu0 0.0
    %113 = vmatpush2.msra.mxu0 0.0
    %114 = vmatprep.subr.mxu0 0.0
    %115 = vmatpush2.msra.mxu0 0.0
    %116 = vmatprep.subr.mxu0 0.0
    %117 = vmatpush2.msra.mxu0 0.0
    %118 = vmatprep.subr.mxu0 0.0
    %119 = vmatpush2.msra.mxu0 0.0
    %120 = vmatprep.subr.mxu0 0.0
    %121 = vmatpush2.msra.mxu0 0.0
    %122 = vmatprep.subr.mxu0 0.0
    %123 = vmatpush2.msra.mxu0 0.0
    %124 = vmatprep.subr.mxu0 0.0
    %125 = vmatpush2.msra.mxu0 0.0
    %126 = vmatprep.subr.mxu0 0.0
    %127 = vmatpush2.msra.mxu0 0.0
    %128 = vmatprep.subr.mxu0 0.0
    %129 = vmatpush2.msra.mxu0 0.0
    %130 = vmatprep.subr.mxu0 0.0
    %131 = vmatpush2.msra.mxu0 0.0
    %132 = vmatprep.subr.mxu0 0.0
    %133 = vmatpush2.msra.mxu0 0.0
    %134 = vmatprep.subr.mxu0 0.0
    %135 = vmatpush2.msra.mxu0 0.0
    %136 = vmatprep.subr.mxu0 0.0
    %137 = vmatpush2.msra.mxu0 0.0
    %138 = vmatprep.subr.mxu0 0.0
    %139 = vmatpush2.msra.mxu0 0.0
    %140 = vmatprep.subr.mxu0 0.0
    %141 = vmatpush2.msra.mxu0 0.0
    %142 = vmatprep.subr.mxu0 0.0
    %143 = vmatpush2.msra.mxu0 0.0
    %144 = vmatprep.mubr.f32.mxu0 0.0
    %145 = vmatmul.mubr.f32.gmra.mxu0 %v69
    %v146 = vpop.f32.mrf.mxu0
    %v147 = vadd.f32 %v60, %v146
    %v148 = vpop.f32.mrf.mxu0
    %v149 = vadd.f32 %v64, %v148
    %150 = vmatprep.mubr.f32.mxu0 0.0
    %151 = vmatmul.mubr.f32.gmra.mxu0 %v72
    %v152 = vpop.f32.mrf.mxu0
    %v153 = vadd.f32 %v60, %v152
    %v154 = vpop.f32.mrf.mxu0
    %v155 = vadd.f32 %v64, %v154
    %156 = vmatprep.mubr.f32.mxu0 0.0
    %157 = vmatmul.mubr.f32.gmra.mxu0 %v75
    %v158 = vpop.f32.mrf.mxu0
    %v159 = vadd.f32 %v60, %v158
    %v160 = vpop.f32.mrf.mxu0
    %v161 = vadd.f32 %v64, %v160
    %162 = vmatprep.mubr.f32.mxu0 0.0
    %163 = vmatmul.mubr.f32.gmra.mxu0 %v78
    %v164 = vpop.f32.mrf.mxu0
    %v165 = vadd.f32 %v60, %v164
    %v166 = vpop.f32.mrf.mxu0
    %v167 = vadd.f32 %v64, %v166
    %168 = vdwg.mxu0
    %169 = vst [vmem:[#allocation7] sm:$0xff] %v147
    %vm170 = vcmask 523264
    %171 = vst.msk [vmem:[#allocation7 + $0x8] sm:$0xff] %vm170, %v149
    %172 = vst [vmem:[#allocation7 + $0x10] sm:$0xff] %v153
    %173 = vst.msk [vmem:[#allocation7 + $0x18] sm:$0xff] %vm170, %v155
    %174 = vst [vmem:[#allocation7 + $0x20] sm:$0xff] %v159
    %175 = vst.msk [vmem:[#allocation7 + $0x28] sm:$0xff] %vm170, %v161
    %176 = vst [vmem:[#allocation7 + $0x30] sm:$0xff] %v165
    %177 = vst.msk [vmem:[#allocation7 + $0x38] sm:$0xff] %vm170, %v167
    // Predicated region
    $region22: #{tpu_custom_call.1} parent=1 // pred_check
      _
    $region23: #{tpu_custom_call.1} parent=1 // pred_check_branch
      %179 = sbr.rel (0) target = $region25
    $region24: #{tpu_custom_call.1} parent=1 // pred_region
      %s181 = ssub.s32 1024, 1024
      %182 = vsyncadd [#allocation4], %s181
      %s183 = sshll.u32 [#allocation7], 4
      %s184 = int_to_ptr.vmem [resolvable:$true] %s183
      %189 = dma.vmem_to_hbm [thread:$0]  %s184, 1024, %s3, [#allocation4], 256, 256, 16
    $region25: #{tpu_custom_call.1} parent=1 // pred_fallthru
      _
    // Predicated region
    $region26: #{tpu_custom_call.1} parent=1 // pred_check
      _
    $region27: #{tpu_custom_call.1} parent=1 // pred_check_branch
      %191 = sbr.rel (0) target = $region29
    $region28: #{tpu_custom_call.1} parent=1 // pred_region
      %192 = dma.done [#allocation4], 1024
    $region29: #{tpu_custom_call.1} parent=1 // pred_fallthru
      _
    %193 = vsyncpa [#allocation3], 1
    %194 = vsyncpa [#allocation6], 1
    %195 = vsyncpa [#allocation4], 1

</llo_original>
